<compile_context>
chip_gen: v7x
topology: tpu7x:2x2x1
jax: 0.10.0
libtpu: 0.0.40
codegen_flags: <defaults>
</compile_context>

<pallas_src>
import jax
import jax.numpy as jnp
from jax import lax
from jax.experimental import pallas as pl
from jax.experimental.pallas import tpu as pltpu


# ------------------------- Pallas kernels -------------------------

def _conv_stats_kernel(w_ref, p_ref, conv_ref, stats_ref):
    # w: (Cout, K) bf16 (resident across the grid), p: (K, TILE) bf16.
    acc = jnp.dot(w_ref[...], p_ref[...],
                  preferred_element_type=jnp.float32)          # (Cout, TILE) f32
    conv_ref[...] = acc.astype(conv_ref.dtype)                 # bf16 writeback
    # Per-tile partial BN statistics taken from the f32 accumulator (full
    # precision).  Only lane 0 (sum) and lane 1 (sum of squares) are written;
    # the wrapper reads only those two lanes (rest of the block is garbage).
    stats_ref[:, 0:1] = jnp.sum(acc, axis=1, keepdims=True)
    stats_ref[:, 1:2] = jnp.sum(acc * acc, axis=1, keepdims=True)


def _bn_relu_kernel(y_ref, scale_ref, shift_ref, out_ref):
    # y: (Cout, TILE) bf16; scale/shift: (Cout, 1) f32 precomputed per channel.
    # Channel-major layout => this store lands directly in NCHW element order,
    # so there is no XLA epilogue transpose.
    y = y_ref[...].astype(jnp.float32)
    z = jnp.maximum(y * scale_ref[...] + shift_ref[...], 0.0)
    out_ref[0] = z.astype(out_ref.dtype)


# ------------------------- wrapper -------------------------

def _pick_tile_cols(hw, n_imgs, budget_cols):
    """Largest multiple-of-128 divisor of H*W that fits the VMEM budget.

    If there is only one image, cap at H*W//2 so the 'parallel' grid axis still
    has >=2 steps (keeps both v7x TensorCores busy).
    """
    if n_imgs == 1:
        budget_cols = min(budget_cols, max(128, hw // 2))
    best = 0
    d = 128
    top = min(hw, budget_cols)
    while d <= top:
        if hw % d == 0:
            best = d
        d += 128
    if best == 0:
        # TODO(synk): generic padded-M path for H*W not a multiple of 128.
        raise NotImplementedError("H*W must be a multiple of 128 for this kernel")
    return best


def conv_bn_relu(x_nchw, weight, bias, gamma, beta, *, eps=1e-5,
                 out_dtype=jnp.bfloat16, vmem_budget_bytes=20 * 2**20):
    """x_nchw: (N, Cin, H, W); weight: (Cout, Cin, 3, 3). Returns (N, Cout, H, W)."""
    N, Cin, H, W = x_nchw.shape
    Cout = weight.shape[0]
    del bias  # exactly cancelled by training-mode BatchNorm's mean subtraction

    K = 9 * Cin
    HW = H * W
    M = N * HW

    # ---- tile size from the VMEM budget: 2x double-buffered patches (bf16) +
    #      2x double-buffered conv output (bf16) + f32 accumulator per column,
    #      plus resident weights and the tiny stats block.  20 MiB target keeps
    #      headroom under the 32 MiB scoped limit on every generation. ----
    fixed = 2 * Cout * K * 2 + 2 * Cout * 128 * 4
    per_col = 2 * K * 2 + 2 * Cout * 2 + Cout * 4
    budget_cols = max(128, (vmem_budget_bytes - fixed) // per_col)
    tile = _pick_tile_cols(HW, N, budget_cols)
    tpi = HW // tile                      # tiles per image
    n_tiles = N * tpi                     # total grid steps for kernel 1

    # ---- glue: channel-major im2col (K, M); columns ordered (n, h, w) so the
    #      conv output is already in NCHW inner order. No M/K padding needed. ----
    x_t = jnp.transpose(x_nchw, (1, 0, 2, 3)).astype(jnp.bfloat16)   # (Cin, N, H, W)
    xp = jnp.pad(x_t, ((0, 0), (0, 0), (1, 1), (1, 1)))              # spatial halo
    patches = jnp.concatenate(
        [xp[:, :, kh:kh + H, kw:kw + W] for kh in range(3) for kw in range(3)],
        axis=0,
    ).reshape(K, M)                                                  # (K, M) bf16

    # weight (Cout, Cin, 3, 3) -> (Cout, kh, kw, Cin) -> (Cout, K) bf16, unpadded.
    w2 = jnp.transpose(weight, (0, 2, 3, 1)).reshape(Cout, K).astype(jnp.bfloat16)

    cparams1 = pltpu.CompilerParams(
        dimension_semantics=("parallel",),
        vmem_limit_bytes=32 * 2**20,
    )

    # ---- kernel 1: tiled conv matmul + per-tile partial BN statistics ----
    conv_out, stats = pl.pallas_call(
        _conv_stats_kernel,
        grid=(n_tiles,),
        in_specs=[
            pl.BlockSpec((Cout, K), lambda i: (0, 0)),     # resident weights
            pl.BlockSpec((K, tile), lambda i: (0, i)),
        ],
        out_specs=[
            pl.BlockSpec((Cout, tile), lambda i: (0, i)),
            pl.BlockSpec((Cout, 128), lambda i: (0, i)),
        ],
        out_shape=[
            jax.ShapeDtypeStruct((Cout, M), jnp.bfloat16),
            jax.ShapeDtypeStruct((Cout, 128 * n_tiles), jnp.float32),
        ],
        compiler_params=cparams1,
    )(w2, patches)

    # ---- combine per-tile statistics (shifted / Chan formulation) and
    #      precompute per-channel scale / shift ONCE ----
    st = stats.reshape(Cout, n_tiles, 128)
    s_t = st[:, :, 0]                                    # (Cout, n_tiles)
    ss_t = st[:, :, 1]
    cnt = jnp.float32(tile)                              # every tile is full (no padding)
    mean_t = s_t / cnt
    m2_t = ss_t - s_t * mean_t                           # per-tile sum of squared deviations
    mean = jnp.sum(s_t, axis=1) / jnp.float32(M)
    var = (jnp.sum(m2_t, axis=1)
           + cnt * jnp.sum((mean_t - mean[:, None]) ** 2, axis=1)) / jnp.float32(M)
    var = jnp.maximum(var, 0.0)

    g32 = gamma.astype(jnp.float32)
    b32 = beta.astype(jnp.float32)
    inv_std = lax.rsqrt(var + eps)
    scale = (g32 * inv_std)[:, None]                     # (Cout, 1)
    shift = (b32 - mean * g32 * inv_std)[:, None]        # (Cout, 1)

    # ---- kernel 2: scale/shift + ReLU, written straight into NCHW layout ----
    cparams2 = pltpu.CompilerParams(
        dimension_semantics=("parallel", "parallel"),
        vmem_limit_bytes=32 * 2**20,
    )
    out = pl.pallas_call(
        _bn_relu_kernel,
        grid=(N, tpi),
        in_specs=[
            pl.BlockSpec((Cout, tile), lambda n, t: (0, n * tpi + t)),
            pl.BlockSpec((Cout, 1), lambda n, t: (0, 0)),
            pl.BlockSpec((Cout, 1), lambda n, t: (0, 0)),
        ],
        out_specs=pl.BlockSpec((1, Cout, tile), lambda n, t: (n, 0, t)),
        out_shape=jax.ShapeDtypeStruct((N, Cout, HW), out_dtype),
        compiler_params=cparams2,
    )(conv_out, scale, shift)

    # Free reshape only -- the data is already in NCHW element order.
    return out.reshape(N, Cout, H, W)


# ------------------------- reference (pure JAX) -------------------------

def conv_bn_relu_ref(x_nchw, weight, bias, gamma, beta, eps=1e-5):
    y = lax.conv_general_dilated(
        x_nchw.astype(jnp.float32), weight.astype(jnp.float32),
        window_strides=(1, 1), padding=((1, 1), (1, 1)),
        dimension_numbers=("NCHW", "OIHW", "NCHW"),
    ) + bias.reshape(1, -1, 1, 1)
    mean = jnp.mean(y, axis=(0, 2, 3), keepdims=True)
    var = jnp.mean((y - mean) ** 2, axis=(0, 2, 3), keepdims=True)
    out = (y - mean) * lax.rsqrt(var + eps) * gamma.reshape(1, -1, 1, 1) \
        + beta.reshape(1, -1, 1, 1)
    return jnp.maximum(out, 0.0)


# ------------------------- main -------------------------

if __name__ == "__main__":
    Nb, Cin, Cout, H, W = 2, 4, 8, 16, 16

    key = jax.random.PRNGKey(0)
    kx, kw, kb = jax.random.split(key, 3)

    x = jax.random.normal(kx, (Nb, Cin, H, W), dtype=jnp.float32)

    # Deterministic parameter init (shapes as in nn.Conv2d / nn.BatchNorm2d)
    fan_in = Cin * 3 * 3
    bound = 1.0 / (fan_in ** 0.5)
    weight = jax.random.uniform(kw, (Cout, Cin, 3, 3), minval=-bound, maxval=bound,
                                dtype=jnp.float32)
    bias = jax.random.uniform(kb, (Cout,), minval=-bound, maxval=bound,
                              dtype=jnp.float32)
    gamma = jnp.ones((Cout,), jnp.float32)   # BatchNorm2d default weight
    beta = jnp.zeros((Cout,), jnp.float32)   # BatchNorm2d default bias

    out = jax.block_until_ready(conv_bn_relu(x, weight, bias, gamma, beta))
    assert out.shape == (Nb, Cout, H, W)
    assert out.dtype == jnp.bfloat16
    out_f32 = out.astype(jnp.float32)

    # Apples-to-apples check: same bf16 rounding of the conv inputs as the kernel
    # (reference keeps the conv bias -> also verifies the bias-cancellation claim).
    # Extra slack covers the bf16 storage of the conv intermediate and the output.
    x_bf = x.astype(jnp.bfloat16).astype(jnp.float32)
    w_bf = weight.astype(jnp.bfloat16).astype(jnp.float32)
    ref_bf16 = conv_bn_relu_ref(x_bf, w_bf, bias, gamma, beta)
    assert jnp.allclose(out_f32, ref_bf16, rtol=2e-2, atol=3e-2), \
        "mismatch vs bf16-consistent reference"

    # Against the pure f32 reference only bf16 roundings (inputs, conv intermediate,
    # output) differ.
    ref_f32 = conv_bn_relu_ref(x, weight, bias, gamma, beta)
    max_err = float(jnp.max(jnp.abs(out_f32 - ref_f32)))
    assert max_err < 6e-2, f"mismatch vs f32 reference (max abs err {max_err})"

    print("KERNEL_OK")
</pallas_src>

<mosaic_0001>
module attributes {stable_mosaic.version = 11 : i64} {
  func.func @_conv_stats_kernel(%arg0: i32, %arg1: memref<8x36xbf16, #tpu.memory_space<vmem>>, %arg2: memref<36x256xbf16, #tpu.memory_space<vmem>>, %arg3: memref<8x256xbf16, #tpu.memory_space<vmem>>, %arg4: memref<8x128xf32, #tpu.memory_space<vmem>>) attributes {dimension_semantics = [#tpu.dimension_semantics<parallel>], iteration_bounds = array<i64: 2>, scalar_prefetch = 0 : i64, scratch_operands = 0 : i64, tpu.core_type = #tpu.core_type<tc>, window_params = [{pipeline_mode = #tpu.pipeline_mode<synchronous>, transform_indices = @transform_0, window_bounds = array<i64: 8, 36>}, {transform_indices = @transform_1, window_bounds = array<i64: 36, 256>}, {transform_indices = @transform_2, window_bounds = array<i64: 8, 256>}, {transform_indices = @transform_3, window_bounds = array<i64: 8, 128>}]} {
    %c0 = arith.constant 0 : index
    %c0_0 = arith.constant 0 : index
    %0 = vector.load %arg1[%c0, %c0_0] : memref<8x36xbf16, #tpu.memory_space<vmem>>, vector<8x36xbf16>
    %c0_1 = arith.constant 0 : index
    %c0_2 = arith.constant 0 : index
    %1 = vector.load %arg2[%c0_1, %c0_2] : memref<36x256xbf16, #tpu.memory_space<vmem>>, vector<36x256xbf16>
    %cst = arith.constant dense<0.000000e+00> : vector<8x256xf32>
    %2 = tpu.matmul %0, %1, %cst {dimension_numbers = #tpu.dot_dimension_numbers<[1], [0], [0], [1], [0, 0, 1, 1], [], []>} : vector<8x36xbf16>, vector<36x256xbf16>, vector<8x256xf32> -> vector<8x256xf32>
    %3 = arith.truncf %2 : vector<8x256xf32> to vector<8x256xbf16>
    %c0_3 = arith.constant 0 : index
    %c0_4 = arith.constant 0 : index
    %4 = vector.load %arg3[%c0_3, %c0_4] : memref<8x256xbf16, #tpu.memory_space<vmem>>, vector<8x256xbf16>
    tpu.vector_store %arg3[%c0_3, %c0_4], %3 {strides = array<i32>} : memref<8x256xbf16, #tpu.memory_space<vmem>>, vector<8x256xbf16>,
    %cst_5 = arith.constant dense<0.000000e+00> : vector<8xf32>
    %5 = vector.multi_reduction <add>, %2, %cst_5 [1] : vector<8x256xf32> to vector<8xf32>
    %6 = vector.shape_cast %5 : vector<8xf32> to vector<8x1xf32>
    %c0_6 = arith.constant 0 : index
    %c0_7 = arith.constant 0 : index
    %7 = vector.load %arg4[%c0_6, %c0_7] : memref<8x128xf32, #tpu.memory_space<vmem>>, vector<8x1xf32>
    tpu.vector_store %arg4[%c0_6, %c0_7], %6 {strides = array<i32>} : memref<8x128xf32, #tpu.memory_space<vmem>>, vector<8x1xf32>,
    %8 = arith.mulf %2, %2 : vector<8x256xf32>
    %cst_8 = arith.constant dense<0.000000e+00> : vector<8xf32>
    %9 = vector.multi_reduction <add>, %8, %cst_8 [1] : vector<8x256xf32> to vector<8xf32>
    %10 = vector.shape_cast %9 : vector<8xf32> to vector<8x1xf32>
    %c0_9 = arith.constant 0 : index
    %c1 = arith.constant 1 : index
    %11 = vector.load %arg4[%c0_9, %c1] : memref<8x128xf32, #tpu.memory_space<vmem>>, vector<8x1xf32>
    tpu.vector_store %arg4[%c0_9, %c1], %10 {strides = array<i32>} : memref<8x128xf32, #tpu.memory_space<vmem>>, vector<8x1xf32>,
    return
  }
  func.func @transform_0(%arg0: i32) -> (i32, i32) {
    %c0_i32 = arith.constant 0 : i32
    %c0_i32_0 = arith.constant 0 : i32
    %c0_i32_1 = arith.constant 0 : i32
    return %c0_i32, %c0_i32_0 : i32, i32
  }
  func.func @transform_1(%arg0: i32) -> (i32, i32) {
    %c0_i32 = arith.constant 0 : i32
    %c0_i32_0 = arith.constant 0 : i32
    return %c0_i32, %arg0 : i32, i32
  }
  func.func @transform_2(%arg0: i32) -> (i32, i32) {
    %c0_i32 = arith.constant 0 : i32
    %c0_i32_0 = arith.constant 0 : i32
    return %c0_i32, %arg0 : i32, i32
  }
  func.func @transform_3(%arg0: i32) -> (i32, i32) {
    %c0_i32 = arith.constant 0 : i32
    %c0_i32_0 = arith.constant 0 : i32
    return %c0_i32, %arg0 : i32, i32
  }
}

</mosaic_0001>

<llo_original>
// kernel: tpu_custom_call.1
$region0: #{tpu_custom_call.1}
  #allocation0 [shape = 'u32[]', space=smem, size = 0x4, offset = 0x4, fixed_abs, tag = 'smem constant byte address 0x4 - core index']
  #allocation1 [shape = 'u32[144,128]{1,0:T(1,128)}', space=vmem, size = 0x12000, scoped, tag = 'internal scratch']
  %s0 = inlined_call_operand.hbm [shape: bf16[8,36], index: 0, kind: input, shape index: {}]
  %s1 = inlined_call_operand.hbm [shape: bf16[36,512], index: 1, kind: input, shape index: {}]
  %s2 = inlined_call_operand.hbm [shape: bf16[8,512], index: 2, kind: output, shape index: {0}]
  %s3 = inlined_call_operand.hbm [shape: f32[8,256], index: 3, kind: output, shape index: {1}]
  %4 = xla_tuple %s2, %s3
  %s5 = sld [smem:[#allocation0]]
  $region57: #{tpu_custom_call.1} parent=0
    _
  %s7 = ssub.s32 1, %s5
  %s8 = scalar_select 0, %s7, %s5
  $region1: #{tpu_custom_call.1} parent=0
    #allocation2 [shape = 'u8[2048]{0}', space=vmem, size = 0x800, scoped, tag = 'input window, operand 0, single buffered']
    #allocation3 [shape = 's32[2]{0}', space=sflag, size = 0x8, scoped, tag = 'scoped memory for tpu_custom_call.1']
    #allocation4 [shape = 's32[2]{0}', space=sflag, size = 0x8, scoped, tag = 'scoped memory for tpu_custom_call.1']
    #allocation5 [shape = 'u8[40960]{0}', space=vmem, size = 0xa000, scoped, tag = 'input window, operand 1']
    #allocation6 [shape = 's32[2]{0}', space=sflag, size = 0x8, scoped, tag = 'scoped memory for tpu_custom_call.1']
    #allocation7 [shape = 'u8[8192]{0}', space=vmem, size = 0x2000, scoped, tag = 'output window, operand 0']
    #allocation8 [shape = 'u8[8192]{0}', space=vmem, size = 0x2000, scoped, tag = 'output window, operand 1']
    #allocation9 [shape = 's32[2]{0}', space=sflag, size = 0x8, scoped, tag = 'scoped memory for tpu_custom_call.1']
    %9 = vsyncpa [#allocation3], 0
    %10 = vsyncpa [#allocation6], 0
    %s11 = scalar_lea.sflag [#allocation6], 1
    %12 = vsyncpa %s11, 0
    %13 = vsyncpa [#allocation4], 0
    %s14 = scalar_lea.sflag [#allocation4], 1
    %15 = vsyncpa %s14, 0
    %16 = vsyncpa [#allocation9], 0
    %s17 = scalar_lea.sflag [#allocation9], 1
    %18 = vsyncpa %s17, 0
    loop: start=0, step=1, limit=4
    $region2: #{tpu_custom_call.1} parent=1 // loop_pre_header
      _
    $region3: #{tpu_custom_call.1} parent=1 // loop_header
      %s20 = sphi 0, %s24
      %p21 = scmp.ge.s32.totalorder %s20, 4
      %s28 = sphi 0, %s28
      %s30 = sphi 0, %s28
      %s31 = sphi 0, %s30
      %s45 = sphi 0, %s31
      %s51 = sphi 0, %s53
      %s54 = sphi 0, %s51
      %s55 = sphi 0, %s54
      %s71 = sphi 0, %s55
      %s77 = sphi 0, %s79
      %s80 = sphi 0, %s77
      %s81 = sphi 0, %s80
      %s97 = sphi 0, %s81
      %s103 = sphi 0, %s105
      %s106 = sphi 0, %s103
      %s107 = sphi 0, %s106
      %s123 = sphi 0, %s107
    $region4: #{tpu_custom_call.1} parent=1 // loop_header_branch
      %23 = sbr.rel (%p21) target = $region8
    $region5: #{tpu_custom_call.1} parent=1 // loop_body
      %s25 = ssub.s32 %s20, 1
      %s26 = ssub.s32 %s20, 2
      %s27 = sadd.s32 %s20, 1
      %s29 = sadd.s32 %s28, 1
      %p32 = scmp.eq.s32.totalorder %s20, 1
      %p33 = scmp.ne.s32.totalorder %s28, %s30
      %p34 = scmp.eq.s32.totalorder %s20, 0
      %p35 = por %p33, %p34
      %p36 = scmp.ne.s32.totalorder %s28, %s30
      %p37 = scmp.eq.s32.totalorder %s25, 1
      %p38 = por %p36, %p37
      %p39 = scmp.ne.s32.totalorder %s30, %s31
      %p40 = scmp.eq.s32.totalorder %s25, 0
      %p41 = por %p39, %p40
      %p42 = scmp.ne.s32.totalorder %s30, %s31
      %p43 = scmp.eq.s32.totalorder %s26, 1
      %p44 = por %p42, %p43
      %p46 = scmp.ne.s32.totalorder %s31, %s45
      %p47 = scmp.eq.s32.totalorder %s26, 0
      %p48 = por %p46, %p47
      %s49 = ssub.s32 %s20, %s27
      %p50 = scmp.eq.s32.totalorder %s49, 0
      %s52 = sadd.s32 %s51, 1
      %s53 = scalar_select %p50, %s51, %s52
      %p56 = pneg %p50
      %p57 = scmp.eq.s32.totalorder %s20, 1
      %p58 = por %p56, %p57
      %p59 = scmp.ne.s32.totalorder %s51, %s54
      %p60 = scmp.eq.s32.totalorder %s20, 0
      %p61 = por %p59, %p60
      %p62 = scmp.ne.s32.totalorder %s51, %s54
      %p63 = scmp.eq.s32.totalorder %s25, 1
      %p64 = por %p62, %p63
      %p65 = scmp.ne.s32.totalorder %s54, %s55
      %p66 = scmp.eq.s32.totalorder %s25, 0
      %p67 = por %p65, %p66
      %p68 = scmp.ne.s32.totalorder %s54, %s55
      %p69 = scmp.eq.s32.totalorder %s26, 1
      %p70 = por %p68, %p69
      %p72 = scmp.ne.s32.totalorder %s55, %s71
      %p73 = scmp.eq.s32.totalorder %s26, 0
      %p74 = por %p72, %p73
      %s75 = ssub.s32 %s20, %s27
      %p76 = scmp.eq.s32.totalorder %s75, 0
      %s78 = sadd.s32 %s77, 1
      %s79 = scalar_select %p76, %s77, %s78
      %p82 = pneg %p76
      %p83 = scmp.eq.s32.totalorder %s20, 1
      %p84 = por %p82, %p83
      %p85 = scmp.ne.s32.totalorder %s77, %s80
      %p86 = scmp.eq.s32.totalorder %s20, 0
      %p87 = por %p85, %p86
      %p88 = scmp.ne.s32.totalorder %s77, %s80
      %p89 = scmp.eq.s32.totalorder %s25, 1
      %p90 = por %p88, %p89
      %p91 = scmp.ne.s32.totalorder %s80, %s81
      %p92 = scmp.eq.s32.totalorder %s25, 0
      %p93 = por %p91, %p92
      %p94 = scmp.ne.s32.totalorder %s80, %s81
      %p95 = scmp.eq.s32.totalorder %s26, 1
      %p96 = por %p94, %p95
      %p98 = scmp.ne.s32.totalorder %s81, %s97
      %p99 = scmp.eq.s32.totalorder %s26, 0
      %p100 = por %p98, %p99
      %s101 = ssub.s32 %s20, %s27
      %p102 = scmp.eq.s32.totalorder %s101, 0
      %s104 = sadd.s32 %s103, 1
      %s105 = scalar_select %p102, %s103, %s104
      %p108 = pneg %p102
      %p109 = scmp.eq.s32.totalorder %s20, 1
      %p110 = por %p108, %p109
      %p111 = scmp.ne.s32.totalorder %s103, %s106
      %p112 = scmp.eq.s32.totalorder %s20, 0
      %p113 = por %p111, %p112
      %p114 = scmp.ne.s32.totalorder %s103, %s106
      %p115 = scmp.eq.s32.totalorder %s25, 1
      %p116 = por %p114, %p115
      %p117 = scmp.ne.s32.totalorder %s106, %s107
      %p118 = scmp.eq.s32.totalorder %s25, 0
      %p119 = por %p117, %p118
      %p120 = scmp.ne.s32.totalorder %s106, %s107
      %p121 = scmp.eq.s32.totalorder %s26, 1
      %p122 = por %p120, %p121
      %p124 = scmp.ne.s32.totalorder %s107, %s123
      %p125 = scmp.eq.s32.totalorder %s26, 0
      %p126 = por %p124, %p125
      %p127 = scmp.le.s32.totalorder 1, %s20
      %p128 = scmp.lt.s32.totalorder %s20, 3
      %p129 = pnand %p127, %p128
      %p130 = pneg %p129
      // Predicated region
      $region9: #{tpu_custom_call.1} parent=5 // pred_check
        _
      $region10: #{tpu_custom_call.1} parent=5 // pred_check_branch
        %132 = sbr.rel (%p129) target = $region12
      $region11: #{tpu_custom_call.1} parent=5 // pred_region
        %s133 = ssub.s32 %s20, 1
        // Predicated region
        $region13: #{tpu_custom_call.1} parent=11 // pred_check
          %p134 = pneg %p41
        $region14: #{tpu_custom_call.1} parent=11 // pred_check_branch
          %136 = sbr.rel (%p134) target = $region16
        $region15: #{tpu_custom_call.1} parent=11 // pred_region
          %s138 = ssub.s32 64, 64
          %139 = vsyncadd [#allocation3], %s138
          %s141 = sshll.u32 [#allocation2], 4
          %s142 = int_to_ptr.vmem [resolvable:$true] %s141
          %144 = dma.hbm_to_vmem [thread:$0]  %s0, 64, %s142, [#allocation3]
        $region16: #{tpu_custom_call.1} parent=11 // pred_fallthru
          _
      $region12: #{tpu_custom_call.1} parent=5 // pred_fallthru
        _
      %p145 = scmp.lt.s32.totalorder %s20, 2
      // Predicated region
      $region17: #{tpu_custom_call.1} parent=5 // pred_check
        %p146 = pneg %p145
      $region18: #{tpu_custom_call.1} parent=5 // pred_check_branch
        %148 = sbr.rel (%p146) target = $region20
      $region19: #{tpu_custom_call.1} parent=5 // pred_region
        // Predicated region
        $region21: #{tpu_custom_call.1} parent=19 // pred_check
          %p149 = pneg %p61
        $region22: #{tpu_custom_call.1} parent=19 // pred_check_branch
          %151 = sbr.rel (%p149) target = $region24
        $region23: #{tpu_custom_call.1} parent=19 // pred_region
          %s152 = sand.u32 %s51, 1
          %s153 = scalar_lea.sflag [#allocation6], %s152
          %s154 = sand.u32 %s51, 1
          %s155 = smul.addr %s154, 40
          %s156 = scalar_lea.vmem [#allocation5], %s155
          %s157 = smul.u32 2, %s20
          %s159 = ssub.s32 640, 640
          %160 = vsyncadd %s153, %s159
          %s161 = smul.addr %s157, 64
          %s162 = scalar_lea.hbm %s1, %s161
          %s163 = sshll.u32 %s156, 4
          %s164 = int_to_ptr.vmem [resolvable:$true] %s163
          %169 = dma.hbm_to_vmem [thread:$0]  %s162, 640, %s164, %s153, 256, 128, 8
        $region24: #{tpu_custom_call.1} parent=19 // pred_fallthru
          _
      $region20: #{tpu_custom_call.1} parent=5 // pred_fallthru
        _
      %p170 = scmp.le.s32.totalorder 1, %s20
      %p171 = scmp.lt.s32.totalorder %s20, 3
      %p172 = pnand %p170, %p171
      %p173 = pneg %p172
      // Predicated region
      $region25: #{tpu_custom_call.1} parent=5 // pred_check
        _
      $region26: #{tpu_custom_call.1} parent=5 // pred_check_branch
        %175 = sbr.rel (%p172) target = $region28
      $region27: #{tpu_custom_call.1} parent=5 // pred_region
        %s176 = ssub.s32 %s20, 1
        // Predicated region
        $region29: #{tpu_custom_call.1} parent=27 // pred_check
          %p177 = pneg %p41
        $region30: #{tpu_custom_call.1} parent=27 // pred_check_branch
          %179 = sbr.rel (%p177) target = $region32
        $region31: #{tpu_custom_call.1} parent=27 // pred_region
          %180 = dma.done [#allocation3], 64
        $region32: #{tpu_custom_call.1} parent=27 // pred_fallthru
          _
        %s181 = sand.u32 %s54, 1
        %s182 = scalar_lea.sflag [#allocation6], %s181
        %s183 = sand.u32 %s54, 1
        %s184 = smul.addr %s183, 40
        %s185 = scalar_lea.vmem [#allocation5], %s184
        // Predicated region
        $region33: #{tpu_custom_call.1} parent=27 // pred_check
          %p186 = pneg %p67
        $region34: #{tpu_custom_call.1} parent=27 // pred_check_branch
          %188 = sbr.rel (%p186) target = $region36
        $region35: #{tpu_custom_call.1} parent=27 // pred_region
          %189 = dma.done %s182, 640
        $region36: #{tpu_custom_call.1} parent=27 // pred_fallthru
          _
        %p190 = pneg %p41
        %p191 = pneg %p38
        %s192 = sand.u32 %s54, 1
        %s193 = scalar_lea.sflag [#allocation6], %s192
        %s194 = sand.u32 %s54, 1
        %s195 = smul.addr %s194, 40
        %s196 = scalar_lea.vmem [#allocation5], %s195
        %p197 = pneg %p67
        %p198 = pneg %p64
        %p199 = pneg %p93
        %p200 = pneg %p90
        %s201 = sand.u32 %s80, 1
        %s202 = scalar_lea.sflag [#allocation4], %s201
        %s203 = sand.u32 %s80, 1
        %s204 = smul.addr %s203, 8
        %s205 = scalar_lea.vmem [#allocation7], %s204
        %p206 = pneg %p119
        %p207 = pneg %p116
        %s208 = sand.u32 %s106, 1
        %s209 = scalar_lea.sflag [#allocation9], %s208
        %s210 = sand.u32 %s106, 1
        %s211 = smul.addr %s210, 8
        %s212 = scalar_lea.vmem [#allocation8], %s211
        %s213 = smul.u32 2, %s25
        %s214 = smul.u32 2, %s25
        %v216 = vld [vmem:[#allocation2] sm:$0xf]
        %v217 = vld [vmem:[%s185] sm:$0xff]
        %v218 = vld [vmem:[%s185 + $0x8] sm:$0xff]
        %v219 = vld [vmem:[%s185 + $0x10] sm:$0xff]
        %v220 = vld [vmem:[%s185 + $0x18] sm:$0xff]
        %v221 = vld [vmem:[%s185 + $0x20] sm:$0x33]
        %v227 = vunpack.c.l.b16 %v217
        %v228 = vunpack.c.h.b16 %v217
        %v229 = vunpack.c.l.b16 %v218
        %v230 = vunpack.c.h.b16 %v218
        %v231 = vunpack.c.l.b16 %v219
        %v232 = vunpack.c.h.b16 %v219
        %v233 = vunpack.c.l.b16 %v220
        %v234 = vunpack.c.h.b16 %v220
        %v235 = vunpack.c.l.b16 %v221
        %v236 = vunpack.c.h.b16 %v221
        %v237 = vpack.c.b16 %v229, %v227
        %v238 = vpack.c.b16 %v230, %v228
        %v239 = vpack.c.b16 %v233, %v231
        %v240 = vpack.c.b16 %v234, %v232
        %v241 = vpack.c.b16 %v235, %v235
        %v242 = vpack.c.b16 %v236, %v236
        %vm247 = vcmask 293888
        %v249 = vsel %vm247, %v216, 0
        %vm251 = vcmask 1041408
        %v253 = vsel %vm251, %v241, 0
        %v256 = vsel %vm251, %v242, 0
        %258 = vmatprep.subr.bf16.mxu0 %v238
        %259 = vmatpush1.bf16.msra.mxu0 %v237
        %260 = vmatprep.subr.bf16.mxu0 %v240
        %261 = vmatpush1.bf16.msra.mxu0 %v239
        %262 = vmatprep.subr.bf16.mxu0 %v256
        %263 = vmatpush1.bf16.msra.mxu0 %v253
        %264 = vmatprep.subr.bf16.mxu0 0
        %265 = vmatpush1.bf16.msra.mxu0 0
        %266 = vmatprep.subr.bf16.mxu0 0
        %267 = vmatpush1.bf16.msra.mxu0 0
        %268 = vmatprep.subr.bf16.mxu0 0
        %269 = vmatpush1.bf16.msra.mxu0 0
        %270 = vmatprep.subr.bf16.mxu0 0
        %271 = vmatpush1.bf16.msra.mxu0 0
        %272 = vmatprep.subr.bf16.mxu0 0
        %273 = vmatpush1.bf16.msra.mxu0 0
        %274 = vmatprep.subr.bf16.mxu0 0
        %275 = vmatpush1.bf16.msra.mxu0 0
        %276 = vmatprep.subr.bf16.mxu0 0
        %277 = vmatpush1.bf16.msra.mxu0 0
        %278 = vmatprep.subr.bf16.mxu0 0
        %279 = vmatpush1.bf16.msra.mxu0 0
        %280 = vmatprep.subr.bf16.mxu0 0
        %281 = vmatpush1.bf16.msra.mxu0 0
        %282 = vmatprep.subr.bf16.mxu0 0
        %283 = vmatpush1.bf16.msra.mxu0 0
        %284 = vmatprep.subr.bf16.mxu0 0
        %285 = vmatpush1.bf16.msra.mxu0 0
        %286 = vmatprep.subr.bf16.mxu0 0
        %287 = vmatpush1.bf16.msra.mxu0 0
        %288 = vmatprep.subr.bf16.mxu0 0
        %289 = vmatpush1.bf16.msra.mxu0 0
        %290 = vmatprep.mubr.bf16.mxu0 0
        %291 = vmatmul.mubr.bf16.gmra.mrb[0].mxu0 %v249
        %v292 = vpop.f32.mrb[0].mxu0
        %v293 = vadd.f32 0.0, %v292
        %v294 = vpop.f32.mrb[0].mxu0
        %v295 = vadd.f32 0.0, %v294
        %v296 = vpop.f32.mrb[0].mxu0
        %v297 = vpop.f32.mrb[0].mxu0
        %298 = vdwg.mxu0
        %v299 = vpack.c.bf16 %v293, %v293
        %v300 = vpack.c.bf16 %v295, %v295
        %v303 = vunpack.c.l.b16 %v299
        %v304 = vunpack.c.l.b16 %v300
        %v305 = vpack.c.b16 %v304, %v303
        %307 = vst [vmem:[%s205] sm:$0xff] %v305
        %v308 = vadd.f32 %v293, %v295
        %309 = vadd.xlane.f32.xlu0 %v308
        %v310 = vpop.xlane.xlu0 %309
        %vm311 = vcmask 7168
        %312 = vst.msk [vmem:[%s212] sm:$0xff] %vm311, %v310
        %v313 = vmul.f32 %v293, %v293
        %v314 = vmul.f32 %v295, %v295
        %v315 = vadd.f32 %v313, %v314
        %316 = vadd.xlane.f32.xlu0 %v315
        %v317 = vpop.xlane.xlu0 %316
        %vm318 = vcmask 15368
        %319 = vst.msk [vmem:[%s212] sm:$0xff] %vm318, %v317
        %s320 = sand.u32 %s80, 1
        %s321 = scalar_lea.sflag [#allocation4], %s320
        %s322 = sand.u32 %s80, 1
        %s323 = smul.addr %s322, 8
        %s324 = scalar_lea.vmem [#allocation7], %s323
        %s325 = sand.u32 %s106, 1
        %s326 = scalar_lea.sflag [#allocation9], %s325
        %s327 = sand.u32 %s106, 1
        %s328 = smul.addr %s327, 8
        %s329 = scalar_lea.vmem [#allocation8], %s328
        // Predicated region
        $region37: #{tpu_custom_call.1} parent=27 // pred_check
          %p330 = pneg %p90
        $region38: #{tpu_custom_call.1} parent=27 // pred_check_branch
          %332 = sbr.rel (%p330) target = $region40
        $region39: #{tpu_custom_call.1} parent=27 // pred_region
          %s333 = smul.u32 2, %s25
          %s335 = ssub.s32 128, 128
          %336 = vsyncadd %s321, %s335
          %s337 = smul.addr %s333, 64
          %s338 = scalar_lea.hbm %s2, %s337
          %s340 = sshll.u32 %s324, 4
          %s341 = int_to_ptr.vmem [resolvable:$true] %s340
          %343 = dma.vmem_to_hbm [thread:$0]  %s341, 128, %s338, %s321
        $region40: #{tpu_custom_call.1} parent=27 // pred_fallthru
          _
        // Predicated region
        $region41: #{tpu_custom_call.1} parent=27 // pred_check
          %p344 = pneg %p116
        $region42: #{tpu_custom_call.1} parent=27 // pred_check_branch
          %346 = sbr.rel (%p344) target = $region44
        $region43: #{tpu_custom_call.1} parent=27 // pred_region
          %s348 = ssub.s32 128, 128
          %349 = vsyncadd %s326, %s348
          %s350 = smul.addr %s25, 128
          %s351 = scalar_lea.hbm %s3, %s350
          %s353 = sshll.u32 %s329, 4
          %s354 = int_to_ptr.vmem [resolvable:$true] %s353
          %356 = dma.vmem_to_hbm [thread:$0]  %s354, 128, %s351, %s326
        $region44: #{tpu_custom_call.1} parent=27 // pred_fallthru
          _
      $region28: #{tpu_custom_call.1} parent=5 // pred_fallthru
        _
      %p357 = scmp.le.s32.totalorder 2, %s20
      // Predicated region
      $region45: #{tpu_custom_call.1} parent=5 // pred_check
        %p358 = pneg %p357
      $region46: #{tpu_custom_call.1} parent=5 // pred_check_branch
        %360 = sbr.rel (%p358) target = $region48
      $region47: #{tpu_custom_call.1} parent=5 // pred_region
        %s361 = ssub.s32 %s20, 2
        // Predicated region
        $region49: #{tpu_custom_call.1} parent=47 // pred_check
          %p362 = pneg %p96
        $region50: #{tpu_custom_call.1} parent=47 // pred_check_branch
          %364 = sbr.rel (%p362) target = $region52
        $region51: #{tpu_custom_call.1} parent=47 // pred_region
          %s365 = sand.u32 %s81, 1
          %s366 = scalar_lea.sflag [#allocation4], %s365
          %s367 = sand.u32 %s81, 1
          %s368 = smul.addr %s367, 8
          %s369 = scalar_lea.vmem [#allocation7], %s368
          %370 = dma.done %s366, 128
        $region52: #{tpu_custom_call.1} parent=47 // pred_fallthru
          _
        // Predicated region
        $region53: #{tpu_custom_call.1} parent=47 // pred_check
          %p371 = pneg %p122
        $region54: #{tpu_custom_call.1} parent=47 // pred_check_branch
          %373 = sbr.rel (%p371) target = $region56
        $region55: #{tpu_custom_call.1} parent=47 // pred_region
          %s374 = sand.u32 %s107, 1
          %s375 = scalar_lea.sflag [#allocation9], %s374
          %s376 = sand.u32 %s107, 1
          %s377 = smul.addr %s376, 8
          %s378 = scalar_lea.vmem [#allocation8], %s377
          %379 = dma.done %s375, 128
        $region56: #{tpu_custom_call.1} parent=47 // pred_fallthru
          _
      $region48: #{tpu_custom_call.1} parent=5 // pred_fallthru
        _
    $region6: #{tpu_custom_call.1} parent=1 // loop_footer
      %s24 = sadd.s32 1, %s20
    $region7: #{tpu_custom_call.1} parent=1 // loop_footer_branch
      %19 = sbr.rel target = $region3
    $region8: #{tpu_custom_call.1} parent=1 // loop_exit
      _
    %380 = vsyncpa [#allocation3], 1
    %s381 = scalar_lea.sflag [#allocation3], 1
    %382 = vsyncpa %s381, 1
    %383 = vsyncpa [#allocation6], 1
    %s384 = scalar_lea.sflag [#allocation6], 1
    %385 = vsyncpa %s384, 1
    %386 = vsyncpa [#allocation4], 1
    %s387 = scalar_lea.sflag [#allocation4], 1
    %388 = vsyncpa %s387, 1
    %389 = vsyncpa [#allocation9], 1
    %s390 = scalar_lea.sflag [#allocation9], 1
    %391 = vsyncpa %s390, 1

</llo_original>
